<compile_context>
chip_gen: v6e
topology: v6e:2x2x1
jax: 0.10.0
libtpu: 0.0.40
codegen_flags: <defaults>
</compile_context>

<pallas_src>
import functools

import jax
import jax.numpy as jnp
from jax.experimental import pallas as pl
from jax.experimental.pallas import tpu as pltpu


def _gelu_exact(x):
    # PyTorch nn.GELU() default = exact erf-based GELU, evaluated in x.dtype.
    inv_sqrt2 = jnp.asarray(0.7071067811865476, dtype=x.dtype)
    half = jnp.asarray(0.5, dtype=x.dtype)
    one = jnp.asarray(1.0, dtype=x.dtype)
    return half * x * (one + jax.lax.erf(x * inv_sqrt2))


def _gaussian_projector_kernel(x_ref, w1_ref, b1_ref, w2_ref, b2_ref, out_ref,
                               *, gelu_dtype):
    # x_ref:  (tb, n_dim)                 VMEM
    # w1_ref: (n_dim, H)                  VMEM (pre-transposed PyTorch weight)
    # b1_ref: (1, H)                      VMEM (f32)
    # w2_ref: (H, Hm_pad)                 VMEM (pre-transposed, mean-pruned,
    #                                           zero-padded to lane multiple)
    # b2_ref: (1, Hm_pad)                 VMEM (f32, zero-padded)
    # out_ref:(tb, Hm_pad)                VMEM output -> mean columns (+pad)
    x = x_ref[...].astype(w1_ref.dtype)
    h = jnp.dot(x, w1_ref[...], preferred_element_type=jnp.float32) + b1_ref[...]
    # GELU in `gelu_dtype` (bf16 on v6e/v7x bf16-weight path: halves VALU work;
    # keep f32 on v5e / f32-weight path).
    h = _gelu_exact(h.astype(gelu_dtype))
    h = h.astype(w2_ref.dtype)
    mean = jnp.dot(h, w2_ref[...], preferred_element_type=jnp.float32) + b2_ref[...]
    out_ref[...] = mean.astype(out_ref.dtype)


def prepare_params(params, n_dim, num_classes, weight_dtype=jnp.float32):
    """One-time (param-load time) preprocessing.

    - transpose weights to (in, out) so the kernel does plain x @ W,
    - prune the logvar half of Linear2's output columns / bias (the eval
      c=None forward only returns `mean`),
    - zero-pad the pruned output dim Hm up to a multiple of 128 so kernel
      stores are lane-dense (padding is sliced off after the kernel),
    - optionally cast weights to bf16 (biases stay f32; accumulation is f32).
    Kept OUT of the jitted forward so there is no per-call transpose/copy.
    """
    w1, b1, w2, b2 = params              # PyTorch: w1 (H, n_dim), w2 (H, H)
    H = n_dim * 2 * num_classes
    Hm = n_dim * num_classes
    Hm_pad = ((Hm + 127) // 128) * 128

    w1t = jnp.asarray(w1).T.astype(weight_dtype)                  # (n_dim, H)
    b1r = jnp.asarray(b1).reshape(1, H).astype(jnp.float32)       # (1, H)

    # Output feature j of Linear2 maps to (class, half, dim); half==0 is the
    # mean slice after view(B, C, 2*n_dim).chunk(2, -1).
    w2t = jnp.asarray(w2).T                                       # (H, H)
    w2m = (w2t.reshape(H, num_classes, 2, n_dim)[:, :, 0, :]
              .reshape(H, Hm).astype(weight_dtype))               # (H, Hm)
    b2m = (jnp.asarray(b2).reshape(num_classes, 2, n_dim)[:, 0, :]
              .reshape(1, Hm).astype(jnp.float32))                # (1, Hm)
    if Hm_pad != Hm:
        w2m = jnp.pad(w2m, ((0, 0), (0, Hm_pad - Hm)))            # (H, Hm_pad)
        b2m = jnp.pad(b2m, ((0, 0), (0, Hm_pad - Hm)))            # (1, Hm_pad)
    return (w1t, b1r, w2m, b2m)


@functools.partial(
    jax.jit,
    static_argnames=("n_dim", "num_classes", "block_b", "out_dtype",
                     "gelu_in_weight_dtype"))
def gaussian_projector_forward(x, prepared, *, n_dim, num_classes, c=None,
                               block_b=512, out_dtype=jnp.float32,
                               gelu_in_weight_dtype=True):
    """Eval-mode forward.  Returns `mean` (B, num_classes, n_dim) when c is None.

    block_b: batch tile of the gridded path (tuned default 512; 512-2048
             amortizes per-step pipeline overhead).
    out_dtype: kernel output dtype; bf16 halves HBM writeback if the caller
             tolerates it (f32 default = PyTorch parity).
    gelu_in_weight_dtype: run GELU in the weight dtype (bf16 savings on
             v6e/v7x).  Set False on v5e (no bf16 VALU).
    """
    w1t, b1r, w2m, b2m = prepared
    B = x.shape[0]
    H = w1t.shape[1]
    Hm = n_dim * num_classes
    Hm_pad = w2m.shape[1]

    gelu_dtype = w1t.dtype if gelu_in_weight_dtype else jnp.float32
    kernel = functools.partial(_gaussian_projector_kernel, gelu_dtype=gelu_dtype)

    if B <= block_b:
        # Small batch: single shot, no grid / pipeline machinery — every
        # operand whole-array resident in VMEM (a few MiB at most here).
        vmem = pl.BlockSpec(memory_space=pltpu.MemorySpace.VMEM)
        mean2d = pl.pallas_call(
            kernel,
            out_shape=jax.ShapeDtypeStruct((B, Hm_pad), out_dtype),
            in_specs=[vmem, vmem, vmem, vmem, vmem],
            out_specs=vmem,
        )(x, w1t, b1r, w2m, b2m)
    else:
        # Gridded path: cdiv grid over the batch handles ragged B (tail rows
        # zero-padded, sliced off after).  Weights stay VMEM-resident across
        # steps (constant index_maps); batch axis "parallel" so v7x's two
        # TensorCores split it (no-op on v5e/v6e).
        # TODO(synk): single-buffer the constant weight specs
        #   (pipeline_mode=pl.Buffered(1)) once weight footprint matters.
        nblk = pl.cdiv(B, block_b)
        Bp = nblk * block_b
        xp = x if Bp == B else jnp.pad(x, ((0, Bp - B), (0, 0)))
        mean2d = pl.pallas_call(
            kernel,
            out_shape=jax.ShapeDtypeStruct((Bp, Hm_pad), out_dtype),
            grid=(nblk,),
            in_specs=[
                pl.BlockSpec((block_b, n_dim), lambda i: (i, 0)),
                pl.BlockSpec((n_dim, H), lambda i: (0, 0)),
                pl.BlockSpec((1, H), lambda i: (0, 0)),
                pl.BlockSpec((H, Hm_pad), lambda i: (0, 0)),
                pl.BlockSpec((1, Hm_pad), lambda i: (0, 0)),
            ],
            out_specs=pl.BlockSpec((block_b, Hm_pad), lambda i: (i, 0)),
            compiler_params=pltpu.CompilerParams(
                dimension_semantics=("parallel",)),
        )(xp, w1t, b1r, w2m, b2m)
        mean2d = mean2d[:B]

    mean = mean2d[:, :Hm].reshape(B, num_classes, n_dim)
    if c is None:
        return mean
    # PyTorch eval-mode forward with c given falls through and returns None.
    return None
    # TODO(synk): training path (reparameterize with randn + KL loss) not
    # implemented — eval-mode forward semantics only.


def init_params(key, n_dim, num_classes):
    """Deterministic Xavier-uniform weights, zero biases (matches _init_param)."""
    H = n_dim * 2 * num_classes
    k1, k2 = jax.random.split(key)
    bound1 = jnp.sqrt(6.0 / (n_dim + H))
    bound2 = jnp.sqrt(6.0 / (H + H))
    w1 = jax.random.uniform(k1, (H, n_dim), jnp.float32, -bound1, bound1)
    b1 = jnp.zeros((H,), jnp.float32)
    w2 = jax.random.uniform(k2, (H, H), jnp.float32, -bound2, bound2)
    b2 = jnp.zeros((H,), jnp.float32)
    return (w1, b1, w2, b2)


def reference_forward(x, params, n_dim, num_classes):
    w1, b1, w2, b2 = params
    h = _gelu_exact(x @ w1.T + b1)
    stats = h @ w2.T + b2
    stats = stats.reshape(x.shape[0], num_classes, 2 * n_dim)
    return stats[..., :n_dim]


if __name__ == "__main__":
    n_dim = 32
    num_classes = 10
    batch = 8

    key = jax.random.PRNGKey(0)
    kx, kp, kb = jax.random.split(key, 3)
    x = jax.random.normal(kx, (batch, n_dim), jnp.float32)
    params = init_params(kp, n_dim, num_classes)
    ref = reference_forward(x, params, n_dim, num_classes)

    # 1) f32 weights, f32 GELU, gridless small-batch path — parity reference.
    prep_f32 = prepare_params(params, n_dim, num_classes, weight_dtype=jnp.float32)
    mean_f32 = jax.block_until_ready(
        gaussian_projector_forward(x, prep_f32, n_dim=n_dim, num_classes=num_classes))
    assert mean_f32.shape == (batch, num_classes, n_dim)
    assert jnp.allclose(mean_f32, ref, atol=1e-4, rtol=1e-4), "f32 mismatch vs reference"

    # 2) bf16 weights + bf16 GELU (v6e/v7x VALU saving) + bf16 output
    #    (halves HBM writeback) — looser tolerance vs the f32 reference.
    prep_bf16 = prepare_params(params, n_dim, num_classes, weight_dtype=jnp.bfloat16)
    mean_bf16 = jax.block_until_ready(
        gaussian_projector_forward(x, prep_bf16, n_dim=n_dim, num_classes=num_classes,
                                   out_dtype=jnp.bfloat16))
    assert mean_bf16.dtype == jnp.bfloat16
    assert jnp.allclose(mean_bf16.astype(jnp.float32), ref,
                        atol=2e-2, rtol=2e-2), "bf16 mismatch vs reference"

    # 3) Ragged larger batch exercises the cdiv-gridded "parallel" path with a
    #    zero-padded tail block (block_b kept small here only to keep the demo
    #    light; the tuned default is 512).
    B_big = 300
    xb = jax.random.normal(kb, (B_big, n_dim), jnp.float32)
    refb = reference_forward(xb, params, n_dim, num_classes)
    mean_b = jax.block_until_ready(
        gaussian_projector_forward(xb, prep_f32, n_dim=n_dim, num_classes=num_classes,
                                   block_b=128))
    assert mean_b.shape == (B_big, num_classes, n_dim)
    assert jnp.allclose(mean_b, refb, atol=1e-4, rtol=1e-4), "gridded mismatch vs reference"

    print("KERNEL_OK")
</pallas_src>

<mosaic_0001>
module attributes {stable_mosaic.version = 11 : i64} {
  func.func @_gaussian_projector_kernel(%arg0: memref<8x32xf32, #tpu.memory_space<vmem>>, %arg1: memref<32x640xf32, #tpu.memory_space<vmem>>, %arg2: memref<1x640xf32, #tpu.memory_space<vmem>>, %arg3: memref<640x384xf32, #tpu.memory_space<vmem>>, %arg4: memref<1x384xf32, #tpu.memory_space<vmem>>, %arg5: memref<8x384xf32, #tpu.memory_space<vmem>>) attributes {dimension_semantics = [], scalar_prefetch = 0 : i64, scratch_operands = 0 : i64, tpu.core_type = #tpu.core_type<tc>} {
    %c0 = arith.constant 0 : index
    %c0_0 = arith.constant 0 : index
    %0 = vector.load %arg0[%c0, %c0_0] : memref<8x32xf32, #tpu.memory_space<vmem>>, vector<8x32xf32>
    %c0_1 = arith.constant 0 : index
    %c0_2 = arith.constant 0 : index
    %1 = vector.load %arg1[%c0_1, %c0_2] : memref<32x640xf32, #tpu.memory_space<vmem>>, vector<32x640xf32>
    %cst = arith.constant dense<0.000000e+00> : vector<8x640xf32>
    %2 = tpu.matmul %0, %1, %cst {dimension_numbers = #tpu.dot_dimension_numbers<[1], [0], [0], [1], [0, 0, 1, 1], [], []>} : vector<8x32xf32>, vector<32x640xf32>, vector<8x640xf32> -> vector<8x640xf32>
    %c0_3 = arith.constant 0 : index
    %c0_4 = arith.constant 0 : index
    %3 = vector.load %arg2[%c0_3, %c0_4] : memref<1x640xf32, #tpu.memory_space<vmem>>, vector<1x640xf32>
    %4 = vector.broadcast %3 : vector<1x640xf32> to vector<8x640xf32>
    %5 = arith.addf %2, %4 : vector<8x640xf32>
    %cst_5 = arith.constant 5.000000e-01 : f32
    %6 = vector.broadcast %cst_5 : f32 to vector<8x640xf32>
    %7 = arith.mulf %6, %5 : vector<8x640xf32>
    %cst_6 = arith.constant 0.707106769 : f32
    %8 = vector.broadcast %cst_6 : f32 to vector<8x640xf32>
    %9 = arith.mulf %5, %8 : vector<8x640xf32>
    %10 = math.erf %9 : vector<8x640xf32>
    %cst_7 = arith.constant 1.000000e+00 : f32
    %11 = vector.broadcast %cst_7 : f32 to vector<8x640xf32>
    %12 = arith.addf %11, %10 : vector<8x640xf32>
    %13 = arith.mulf %7, %12 : vector<8x640xf32>
    %c0_8 = arith.constant 0 : index
    %c0_9 = arith.constant 0 : index
    %14 = vector.load %arg3[%c0_8, %c0_9] : memref<640x384xf32, #tpu.memory_space<vmem>>, vector<640x384xf32>
    %cst_10 = arith.constant dense<0.000000e+00> : vector<8x384xf32>
    %15 = tpu.matmul %13, %14, %cst_10 {dimension_numbers = #tpu.dot_dimension_numbers<[1], [0], [0], [1], [0, 0, 1, 1], [], []>} : vector<8x640xf32>, vector<640x384xf32>, vector<8x384xf32> -> vector<8x384xf32>
    %c0_11 = arith.constant 0 : index
    %c0_12 = arith.constant 0 : index
    %16 = vector.load %arg4[%c0_11, %c0_12] : memref<1x384xf32, #tpu.memory_space<vmem>>, vector<1x384xf32>
    %17 = vector.broadcast %16 : vector<1x384xf32> to vector<8x384xf32>
    %18 = arith.addf %15, %17 : vector<8x384xf32>
    %c0_13 = arith.constant 0 : index
    %c0_14 = arith.constant 0 : index
    %19 = vector.load %arg5[%c0_13, %c0_14] : memref<8x384xf32, #tpu.memory_space<vmem>>, vector<8x384xf32>
    tpu.vector_store %arg5[%c0_13, %c0_14], %18 {strides = array<i32>} : memref<8x384xf32, #tpu.memory_space<vmem>>, vector<8x384xf32>,
    return
  }
}

</mosaic_0001>

<llo_original>
// kernel: gaussian_projector_forward.1
$region0: #{gaussian_projector_forward.1}
  #allocation0 [shape = 'u32[]', space=smem, size = 0x4, offset = 0x4, fixed_abs, tag = 'smem constant byte address 0x4 - core index']
  #allocation1 [shape = 'u32[144,128]{1,0:T(1,128)}', space=vmem, size = 0x12000, scoped, tag = 'internal scratch']
  %s0 = inlined_call_operand.hbm [shape: f32[8,32], index: 0, kind: input, shape index: {}]
  %s1 = inlined_call_operand.hbm [shape: f32[32,640], index: 1, kind: input, shape index: {}]
  %s2 = inlined_call_operand.hbm [shape: f32[1,640], index: 2, kind: input, shape index: {}]
  %s3 = inlined_call_operand.hbm [shape: f32[640,384], index: 3, kind: input, shape index: {}]
  %s4 = inlined_call_operand.vmem [shape: f32[1,384], index: 4, kind: input, shape index: {}]
  %s5 = inlined_call_operand.vmem [shape: f32[8,384], index: 5, kind: output, shape index: {}]
  %s6 = sld [smem:[#allocation0]]
  $region46: #{gaussian_projector_forward.1} parent=0
    _
  %s8 = ssub.s32 1, %s6
  %s9 = scalar_select 0, %s8, %s6
  $region1: #{gaussian_projector_forward.1} parent=0
    #allocation2 [shape = 'u8[4096]{0}', space=vmem, size = 0x1000, scoped, tag = 'input window, operand 0, single buffered']
    #allocation3 [shape = 's32[1]{0}', space=sflag, size = 0x4, scoped, tag = 'scoped memory for gaussian_projector_forward.1']
    #allocation4 [shape = 'u8[81920]{0}', space=vmem, size = 0x14000, scoped, tag = 'input window, operand 1, single buffered']
    #allocation5 [shape = 's32[1]{0}', space=sflag, size = 0x4, scoped, tag = 'scoped memory for gaussian_projector_forward.1']
    #allocation6 [shape = 'u8[2560]{0}', space=vmem, size = 0xc00, scoped, tag = 'input window, operand 2, single buffered']
    #allocation7 [shape = 'u8[983040]{0}', space=vmem, size = 0xf0000, scoped, tag = 'input window, operand 3, single buffered']
    #allocation8 [shape = 's32[1]{0}', space=sflag, size = 0x4, scoped, tag = 'scoped memory for gaussian_projector_forward.1']
    %10 = vsyncpa [#allocation3], 0
    %11 = vsyncpa [#allocation5], 0
    %12 = vsyncpa [#allocation8], 0
    // Predicated region
    $region2: #{gaussian_projector_forward.1} parent=1 // pred_check
      _
    $region3: #{gaussian_projector_forward.1} parent=1 // pred_check_branch
      %14 = sbr.rel (0) target = $region5
    $region4: #{gaussian_projector_forward.1} parent=1 // pred_region
      %s16 = ssub.s32 128, 128
      %17 = vsyncadd [#allocation3], %s16
      %s19 = sshll.u32 [#allocation2], 4
      %s20 = int_to_ptr.vmem [resolvable:$true] %s19
      %22 = dma.hbm_to_vmem [thread:$0]  %s0, 128, %s20, [#allocation3]
    $region5: #{gaussian_projector_forward.1} parent=1 // pred_fallthru
      _
    // Predicated region
    $region6: #{gaussian_projector_forward.1} parent=1 // pred_check
      _
    $region7: #{gaussian_projector_forward.1} parent=1 // pred_check_branch
      %24 = sbr.rel (0) target = $region9
    $region8: #{gaussian_projector_forward.1} parent=1 // pred_region
      %s26 = ssub.s32 2560, 2560
      %27 = vsyncadd [#allocation5], %s26
      %s28 = sshll.u32 [#allocation4], 4
      %s29 = int_to_ptr.vmem [resolvable:$true] %s28
      %34 = dma.hbm_to_vmem [thread:$0]  %s1, 2560, %s29, [#allocation5], 640, 640, 40
    $region9: #{gaussian_projector_forward.1} parent=1 // pred_fallthru
      _
    // Predicated region
    $region10: #{gaussian_projector_forward.1} parent=1 // pred_check
      _
    $region11: #{gaussian_projector_forward.1} parent=1 // pred_check_branch
      %36 = sbr.rel (0) target = $region13
    $region12: #{gaussian_projector_forward.1} parent=1 // pred_region
      %s38 = ssub.s32 80, 80
      %39 = vsyncadd [#allocation5], %s38
      %s41 = sshll.u32 [#allocation6], 4
      %s42 = int_to_ptr.vmem [resolvable:$true] %s41
      %44 = dma.hbm_to_vmem [thread:$0]  %s2, 80, %s42, [#allocation5]
    $region13: #{gaussian_projector_forward.1} parent=1 // pred_fallthru
      _
    // Predicated region
    $region14: #{gaussian_projector_forward.1} parent=1 // pred_check
      _
    $region15: #{gaussian_projector_forward.1} parent=1 // pred_check_branch
      %46 = sbr.rel (0) target = $region17
    $region16: #{gaussian_projector_forward.1} parent=1 // pred_region
      %s48 = ssub.s32 30720, 30720
      %49 = vsyncadd [#allocation8], %s48
      %s50 = sshll.u32 [#allocation7], 4
      %s51 = int_to_ptr.vmem [resolvable:$true] %s50
      %56 = dma.hbm_to_vmem [thread:$0]  %s3, 30720, %s51, [#allocation8], 384, 384, 24
    $region17: #{gaussian_projector_forward.1} parent=1 // pred_fallthru
      _
    // Predicated region
    $region18: #{gaussian_projector_forward.1} parent=1 // pred_check
      _
    $region19: #{gaussian_projector_forward.1} parent=1 // pred_check_branch
      %58 = sbr.rel (0) target = $region21
    $region20: #{gaussian_projector_forward.1} parent=1 // pred_region
      _
    $region21: #{gaussian_projector_forward.1} parent=1 // pred_fallthru
      _
    // Predicated region
    $region22: #{gaussian_projector_forward.1} parent=1 // pred_check
      _
    $region23: #{gaussian_projector_forward.1} parent=1 // pred_check_branch
      %60 = sbr.rel (0) target = $region25
    $region24: #{gaussian_projector_forward.1} parent=1 // pred_region
      %61 = dma.done [#allocation3], 128
    $region25: #{gaussian_projector_forward.1} parent=1 // pred_fallthru
      _
    // Predicated region
    $region26: #{gaussian_projector_forward.1} parent=1 // pred_check
      _
    $region27: #{gaussian_projector_forward.1} parent=1 // pred_check_branch
      %63 = sbr.rel (0) target = $region29
    $region28: #{gaussian_projector_forward.1} parent=1 // pred_region
      %64 = dma.done [#allocation5], 2560
    $region29: #{gaussian_projector_forward.1} parent=1 // pred_fallthru
      _
    // Predicated region
    $region30: #{gaussian_projector_forward.1} parent=1 // pred_check
      _
    $region31: #{gaussian_projector_forward.1} parent=1 // pred_check_branch
      %66 = sbr.rel (0) target = $region33
    $region32: #{gaussian_projector_forward.1} parent=1 // pred_region
      %67 = dma.done [#allocation5], 80
    $region33: #{gaussian_projector_forward.1} parent=1 // pred_fallthru
      _
    // Predicated region
    $region34: #{gaussian_projector_forward.1} parent=1 // pred_check
      _
    $region35: #{gaussian_projector_forward.1} parent=1 // pred_check_branch
      %69 = sbr.rel (0) target = $region37
    $region36: #{gaussian_projector_forward.1} parent=1 // pred_region
      %70 = dma.done [#allocation8], 30720
    $region37: #{gaussian_projector_forward.1} parent=1 // pred_fallthru
      _
    %v71 = vld [vmem:[#allocation2] sm:$0xff]
    %v72 = vld [vmem:[#allocation4] sm:$0xff]
    %v73 = vld [vmem:[#allocation4 + $0x8] sm:$0xff]
    %v74 = vld [vmem:[#allocation4 + $0x10] sm:$0xff]
    %v75 = vld [vmem:[#allocation4 + $0x18] sm:$0xff]
    %v76 = vld [vmem:[#allocation4 + $0x20] sm:$0xff]
    %v77 = vld [vmem:[#allocation4 + $0x28] sm:$0xff]
    %v78 = vld [vmem:[#allocation4 + $0x30] sm:$0xff]
    %v79 = vld [vmem:[#allocation4 + $0x38] sm:$0xff]
    %v80 = vld [vmem:[#allocation4 + $0x40] sm:$0xff]
    %v81 = vld [vmem:[#allocation4 + $0x48] sm:$0xff]
    %v82 = vld [vmem:[#allocation4 + $0x50] sm:$0xff]
    %v83 = vld [vmem:[#allocation4 + $0x58] sm:$0xff]
    %v84 = vld [vmem:[#allocation4 + $0x60] sm:$0xff]
    %v85 = vld [vmem:[#allocation4 + $0x68] sm:$0xff]
    %v86 = vld [vmem:[#allocation4 + $0x70] sm:$0xff]
    %v87 = vld [vmem:[#allocation4 + $0x78] sm:$0xff]
    %v88 = vld [vmem:[#allocation4 + $0x80] sm:$0xff]
    %v89 = vld [vmem:[#allocation4 + $0x88] sm:$0xff]
    %v90 = vld [vmem:[#allocation4 + $0x90] sm:$0xff]
    %v91 = vld [vmem:[#allocation4 + $0x98] sm:$0xff]
    %v92 = vld [vmem:[#allocation6] sm:$0x1f]
    %v94 = vlaneseq
    %v95 = vshrl.u32 %v94, 7
    %v96 = vsub.s32 0, %v95
    %v97 = vrot.slane %v92, %v96
    %v98 = vlaneseq
    %v99 = vshrl.u32 %v98, 7
    %v100 = vsub.s32 1, %v99
    %v101 = vrot.slane %v92, %v100
    %v102 = vlaneseq
    %v103 = vshrl.u32 %v102, 7
    %v104 = vsub.s32 2, %v103
    %v105 = vrot.slane %v92, %v104
    %v106 = vlaneseq
    %v107 = vshrl.u32 %v106, 7
    %v108 = vsub.s32 3, %v107
    %v109 = vrot.slane %v92, %v108
    %v110 = vlaneseq
    %v111 = vshrl.u32 %v110, 7
    %v112 = vsub.s32 4, %v111
    %v113 = vrot.slane %v92, %v112
    %vm119 = vcmask 261120
    %v121 = vsel %vm119, %v71, 0
    %123 = vmatprep.subr.mxu0 0.0
    %124 = vmatpush1.msra.mxu0 0.0
    %125 = vmatprep.subr.mxu0 0.0
    %126 = vmatpush1.msra.mxu0 0.0
    %127 = vmatprep.subr.mxu0 0.0
    %128 = vmatpush1.msra.mxu0 0.0
    %129 = vmatprep.subr.mxu0 0.0
    %130 = vmatpush1.msra.mxu0 0.0
    %131 = vmatprep.subr.mxu0 0.0
    %132 = vmatpush1.msra.mxu0 0.0
    %133 = vmatprep.subr.mxu0 0.0
    %134 = vmatpush1.msra.mxu0 0.0
    %135 = vmatprep.subr.mxu0 0.0
    %136 = vmatpush1.msra.mxu0 0.0
    %137 = vmatprep.subr.mxu0 0.0
    %138 = vmatpush1.msra.mxu0 0.0
    %139 = vmatprep.subr.mxu0 0.0
    %140 = vmatpush1.msra.mxu0 0.0
    %141 = vmatprep.subr.mxu0 0.0
    %142 = vmatpush1.msra.mxu0 0.0
    %143 = vmatprep.subr.mxu0 0.0
    %144 = vmatpush1.msra.mxu0 0.0
    %145 = vmatprep.subr.mxu0 0.0
    %146 = vmatpush1.msra.mxu0 0.0
    %147 = vmatprep.subr.mxu0 %v88
    %148 = vmatpush1.msra.mxu0 %v87
    %149 = vmatprep.subr.mxu0 %v83
    %150 = vmatpush1.msra.mxu0 %v82
    %151 = vmatprep.subr.mxu0 %v78
    %152 = vmatpush1.msra.mxu0 %v77
    %153 = vmatprep.subr.mxu0 %v73
    %154 = vmatpush1.msra.mxu0 %v72
    %155 = vmatprep.subr.mxu0 0.0
    %156 = vmatpush2.msra.mxu0 0.0
    %157 = vmatprep.subr.mxu0 0.0
    %158 = vmatpush2.msra.mxu0 0.0
    %159 = vmatprep.subr.mxu0 0.0
    %160 = vmatpush2.msra.mxu0 0.0
    %161 = vmatprep.subr.mxu0 0.0
    %162 = vmatpush2.msra.mxu0 0.0
    %163 = vmatprep.subr.mxu0 0.0
    %164 = vmatpush2.msra.mxu0 0.0
    %165 = vmatprep.subr.mxu0 0.0
    %166 = vmatpush2.msra.mxu0 0.0
    %167 = vmatprep.subr.mxu0 0.0
    %168 = vmatpush2.msra.mxu0 0.0
    %169 = vmatprep.subr.mxu0 0.0
    %170 = vmatpush2.msra.mxu0 0.0
    %171 = vmatprep.subr.mxu0 0.0
    %172 = vmatpush2.msra.mxu0 0.0
    %173 = vmatprep.subr.mxu0 0.0
    %174 = vmatpush2.msra.mxu0 0.0
    %175 = vmatprep.subr.mxu0 0.0
    %176 = vmatpush2.msra.mxu0 0.0
    %177 = vmatprep.subr.mxu0 0.0
    %178 = vmatpush2.msra.mxu0 0.0
    %179 = vmatprep.subr.mxu0 0.0
    %180 = vmatpush2.msra.mxu0 0.0
    %181 = vmatprep.subr.mxu0 0.0
    %182 = vmatpush2.msra.mxu0 0.0
    %183 = vmatprep.subr.mxu0 0.0
    %184 = vmatpush2.msra.mxu0 0.0
    %185 = vmatprep.subr.mxu0 0.0
    %186 = vmatpush2.msra.mxu0 0.0
    %187 = vmatprep.mubr.f32.mxu0 0.0
    %188 = vmatmul.mubr.f32.gmra.mxu0 %v121
    %v189 = vpop.f32.mrf.mxu0
    %v190 = vadd.f32 %v97, %v189
    %v191 = vpop.f32.mrf.mxu0
    %v192 = vadd.f32 %v101, %v191
    %193 = vdwg.mxu0
    %194 = vmatprep.subr.mxu0 0.0
    %195 = vmatpush1.msra.mxu0 0.0
    %196 = vmatprep.subr.mxu0 0.0
    %197 = vmatpush1.msra.mxu0 0.0
    %198 = vmatprep.subr.mxu0 0.0
    %199 = vmatpush1.msra.mxu0 0.0
    %200 = vmatprep.subr.mxu0 0.0
    %201 = vmatpush1.msra.mxu0 0.0
    %202 = vmatprep.subr.mxu0 0.0
    %203 = vmatpush1.msra.mxu0 0.0
    %204 = vmatprep.subr.mxu0 0.0
    %205 = vmatpush1.msra.mxu0 0.0
    %206 = vmatprep.subr.mxu0 0.0
    %207 = vmatpush1.msra.mxu0 0.0
    %208 = vmatprep.subr.mxu0 0.0
    %209 = vmatpush1.msra.mxu0 0.0
    %210 = vmatprep.subr.mxu0 0.0
    %211 = vmatpush1.msra.mxu0 0.0
    %212 = vmatprep.subr.mxu0 0.0
    %213 = vmatpush1.msra.mxu0 0.0
    %214 = vmatprep.subr.mxu0 0.0
    %215 = vmatpush1.msra.mxu0 0.0
    %216 = vmatprep.subr.mxu0 0.0
    %217 = vmatpush1.msra.mxu0 0.0
    %218 = vmatprep.subr.mxu0 %v90
    %219 = vmatpush1.msra.mxu0 %v89
    %220 = vmatprep.subr.mxu0 %v85
    %221 = vmatpush1.msra.mxu0 %v84
    %222 = vmatprep.subr.mxu0 %v80
    %223 = vmatpush1.msra.mxu0 %v79
    %224 = vmatprep.subr.mxu0 %v75
    %225 = vmatpush1.msra.mxu0 %v74
    %226 = vmatprep.subr.mxu0 0.0
    %227 = vmatpush2.msra.mxu0 0.0
    %228 = vmatprep.subr.mxu0 0.0
    %229 = vmatpush2.msra.mxu0 0.0
    %230 = vmatprep.subr.mxu0 0.0
    %231 = vmatpush2.msra.mxu0 0.0
    %232 = vmatprep.subr.mxu0 0.0
    %233 = vmatpush2.msra.mxu0 0.0
    %234 = vmatprep.subr.mxu0 0.0
    %235 = vmatpush2.msra.mxu0 0.0
    %236 = vmatprep.subr.mxu0 0.0
    %237 = vmatpush2.msra.mxu0 0.0
    %238 = vmatprep.subr.mxu0 0.0
    %239 = vmatpush2.msra.mxu0 0.0
    %240 = vmatprep.subr.mxu0 0.0
    %241 = vmatpush2.msra.mxu0 0.0
    %242 = vmatprep.subr.mxu0 0.0
    %243 = vmatpush2.msra.mxu0 0.0
    %244 = vmatprep.subr.mxu0 0.0
    %245 = vmatpush2.msra.mxu0 0.0
    %246 = vmatprep.subr.mxu0 0.0
    %247 = vmatpush2.msra.mxu0 0.0
    %248 = vmatprep.subr.mxu0 0.0
    %249 = vmatpush2.msra.mxu0 0.0
    %250 = vmatprep.subr.mxu0 0.0
    %251 = vmatpush2.msra.mxu0 0.0
    %252 = vmatprep.subr.mxu0 0.0
    %253 = vmatpush2.msra.mxu0 0.0
    %254 = vmatprep.subr.mxu0 0.0
    %255 = vmatpush2.msra.mxu0 0.0
    %256 = vmatprep.subr.mxu0 0.0
    %257 = vmatpush2.msra.mxu0 0.0
    %258 = vmatprep.mubr.f32.mxu0 0.0
    %259 = vmatmul.mubr.f32.gmra.mxu0 %v121
    %v260 = vpop.f32.mrf.mxu0
    %v261 = vadd.f32 %v105, %v260
    %v262 = vpop.f32.mrf.mxu0
    %v263 = vadd.f32 %v109, %v262
    %264 = vdwg.mxu0
    %265 = vmatprep.subr.mxu0 0.0
    %266 = vmatpush1.msra.mxu0 0.0
    %267 = vmatprep.subr.mxu0 0.0
    %268 = vmatpush1.msra.mxu0 0.0
    %269 = vmatprep.subr.mxu0 0.0
    %270 = vmatpush1.msra.mxu0 0.0
    %271 = vmatprep.subr.mxu0 0.0
    %272 = vmatpush1.msra.mxu0 0.0
    %273 = vmatprep.subr.mxu0 0.0
    %274 = vmatpush1.msra.mxu0 0.0
    %275 = vmatprep.subr.mxu0 0.0
    %276 = vmatpush1.msra.mxu0 0.0
    %277 = vmatprep.subr.mxu0 0.0
    %278 = vmatpush1.msra.mxu0 0.0
    %279 = vmatprep.subr.mxu0 0.0
    %280 = vmatpush1.msra.mxu0 0.0
    %281 = vmatprep.subr.mxu0 0.0
    %282 = vmatpush1.msra.mxu0 0.0
    %283 = vmatprep.subr.mxu0 0.0
    %284 = vmatpush1.msra.mxu0 0.0
    %285 = vmatprep.subr.mxu0 0.0
    %286 = vmatpush1.msra.mxu0 0.0
    %287 = vmatprep.subr.mxu0 0.0
    %288 = vmatpush1.msra.mxu0 0.0
    %289 = vmatprep.subr.mxu0 0.0
    %290 = vmatpush1.msra.mxu0 %v91
    %291 = vmatprep.subr.mxu0 0.0
    %292 = vmatpush1.msra.mxu0 %v86
    %293 = vmatprep.subr.mxu0 0.0
    %294 = vmatpush1.msra.mxu0 %v81
    %295 = vmatprep.subr.mxu0 0.0
    %296 = vmatpush1.msra.mxu0 %v76
    %297 = vmatprep.subr.mxu0 0.0
    %298 = vmatpush2.msra.mxu0 0.0
    %299 = vmatprep.subr.mxu0 0.0
    %300 = vmatpush2.msra.mxu0 0.0
    %301 = vmatprep.subr.mxu0 0.0
    %302 = vmatpush2.msra.mxu0 0.0
    %303 = vmatprep.subr.mxu0 0.0
    %304 = vmatpush2.msra.mxu0 0.0
    %305 = vmatprep.subr.mxu0 0.0
    %306 = vmatpush2.msra.mxu0 0.0
    %307 = vmatprep.subr.mxu0 0.0
    %308 = vmatpush2.msra.mxu0 0.0
    %309 = vmatprep.subr.mxu0 0.0
    %310 = vmatpush2.msra.mxu0 0.0
    %311 = vmatprep.subr.mxu0 0.0
    %312 = vmatpush2.msra.mxu0 0.0
    %313 = vmatprep.subr.mxu0 0.0
    %314 = vmatpush2.msra.mxu0 0.0
    %315 = vmatprep.subr.mxu0 0.0
    %316 = vmatpush2.msra.mxu0 0.0
    %317 = vmatprep.subr.mxu0 0.0
    %318 = vmatpush2.msra.mxu0 0.0
    %319 = vmatprep.subr.mxu0 0.0
    %320 = vmatpush2.msra.mxu0 0.0
    %321 = vmatprep.subr.mxu0 0.0
    %322 = vmatpush2.msra.mxu0 0.0
    %323 = vmatprep.subr.mxu0 0.0
    %324 = vmatpush2.msra.mxu0 0.0
    %325 = vmatprep.subr.mxu0 0.0
    %326 = vmatpush2.msra.mxu0 0.0
    %327 = vmatprep.subr.mxu0 0.0
    %328 = vmatpush2.msra.mxu0 0.0
    %329 = vmatprep.mubr.f32.mxu0 0.0
    %330 = vmatmul.mubr.f32.gmra.mxu0 %v121
    %v331 = vpop.f32.mrf.mxu0
    %v332 = vadd.f32 %v113, %v331
    %v333 = vpop.f32.mrf.mxu0
    %334 = vdwg.mxu0
    %v335 = vmul.f32 %v190, 0.5
    %v336 = vmul.f32 %v192, 0.5
    %v337 = vmul.f32 %v261, 0.5
    %v338 = vmul.f32 %v263, 0.5
    %v339 = vmul.f32 %v332, 0.5
    %v340 = vmul.f32 %v190, 0.70710677
    %v341 = vmul.f32 %v192, 0.70710677
    %v342 = vmul.f32 %v261, 0.70710677
    %v343 = vmul.f32 %v263, 0.70710677
    %v344 = vmul.f32 %v332, 0.70710677
    %v345 = verf.f32.pop %v340
    %v346 = verf.f32.pop %v341
    %v347 = verf.f32.pop %v342
    %v348 = verf.f32.pop %v343
    %v349 = verf.f32.pop %v344
    %v350 = vadd.f32 %v345, 1.0
    %v351 = vadd.f32 %v346, 1.0
    %v352 = vadd.f32 %v347, 1.0
    %v353 = vadd.f32 %v348, 1.0
    %v354 = vadd.f32 %v349, 1.0
    %v355 = vmul.f32 %v335, %v350
    %v356 = vmul.f32 %v336, %v351
    %v357 = vmul.f32 %v337, %v352
    %v358 = vmul.f32 %v338, %v353
    %v359 = vmul.f32 %v339, %v354
    %v360 = vld [vmem:[#allocation7] sm:$0xff]
    %v361 = vld [vmem:[#allocation7 + $0x8] sm:$0xff]
    %v362 = vld [vmem:[#allocation7 + $0x10] sm:$0xff]
    %v363 = vld [vmem:[#allocation7 + $0x18] sm:$0xff]
    %v364 = vld [vmem:[#allocation7 + $0x20] sm:$0xff]
    %v365 = vld [vmem:[#allocation7 + $0x28] sm:$0xff]
    %v366 = vld [vmem:[#allocation7 + $0x30] sm:$0xff]
    %v367 = vld [vmem:[#allocation7 + $0x38] sm:$0xff]
    %v368 = vld [vmem:[#allocation7 + $0x40] sm:$0xff]
    %v369 = vld [vmem:[#allocation7 + $0x48] sm:$0xff]
    %v370 = vld [vmem:[#allocation7 + $0x50] sm:$0xff]
    %v371 = vld [vmem:[#allocation7 + $0x58] sm:$0xff]
    %v372 = vld [vmem:[#allocation7 + $0x60] sm:$0xff]
    %v373 = vld [vmem:[#allocation7 + $0x68] sm:$0xff]
    %v374 = vld [vmem:[#allocation7 + $0x70] sm:$0xff]
    %v375 = vld [vmem:[#allocation7 + $0x78] sm:$0xff]
    %v376 = vld [vmem:[#allocation7 + $0x80] sm:$0xff]
    %v377 = vld [vmem:[#allocation7 + $0x88] sm:$0xff]
    %v378 = vld [vmem:[#allocation7 + $0x90] sm:$0xff]
    %v379 = vld [vmem:[#allocation7 + $0x98] sm:$0xff]
    %v380 = vld [vmem:[#allocation7 + $0xa0] sm:$0xff]
    %v381 = vld [vmem:[#allocation7 + $0xa8] sm:$0xff]
    %v382 = vld [vmem:[#allocation7 + $0xb0] sm:$0xff]
    %v383 = vld [vmem:[#allocation7 + $0xb8] sm:$0xff]
    %v384 = vld [vmem:[#allocation7 + $0xc0] sm:$0xff]
    %v385 = vld [vmem:[#allocation7 + $0xc8] sm:$0xff]
    %v386 = vld [vmem:[#allocation7 + $0xd0] sm:$0xff]
    %v387 = vld [vmem:[#allocation7 + $0xd8] sm:$0xff]
    %v388 = vld [vmem:[#allocation7 + $0xe0] sm:$0xff]
    %v389 = vld [vmem:[#allocation7 + $0xe8] sm:$0xff]
    %v390 = vld [vmem:[#allocation7 + $0xf0] sm:$0xff]
    %v391 = vld [vmem:[#allocation7 + $0xf8] sm:$0xff]
    %v392 = vld [vmem:[#allocation7 + $0x100] sm:$0xff]
    %v393 = vld [vmem:[#allocation7 + $0x108] sm:$0xff]
    %v394 = vld [vmem:[#allocation7 + $0x110] sm:$0xff]
    %v395 = vld [vmem:[#allocation7 + $0x118] sm:$0xff]
    %v396 = vld [vmem:[#allocation7 + $0x120] sm:$0xff]
    %v397 = vld [vmem:[#allocation7 + $0x128] sm:$0xff]
    %v398 = vld [vmem:[#allocation7 + $0x130] sm:$0xff]
    %v399 = vld [vmem:[#allocation7 + $0x138] sm:$0xff]
    %v400 = vld [vmem:[#allocation7 + $0x140] sm:$0xff]
    %v401 = vld [vmem:[#allocation7 + $0x148] sm:$0xff]
    %v402 = vld [vmem:[#allocation7 + $0x150] sm:$0xff]
    %v403 = vld [vmem:[#allocation7 + $0x158] sm:$0xff]
    %v404 = vld [vmem:[#allocation7 + $0x160] sm:$0xff]
    %v405 = vld [vmem:[#allocation7 + $0x168] sm:$0xff]
    %v406 = vld [vmem:[#allocation7 + $0x170] sm:$0xff]
    %v407 = vld [vmem:[#allocation7 + $0x178] sm:$0xff]
    %v408 = vld [vmem:[#allocation7 + $0x180] sm:$0xff]
    %v409 = vld [vmem:[#allocation7 + $0x188] sm:$0xff]
    %v410 = vld [vmem:[#allocation7 + $0x190] sm:$0xff]
    %v411 = vld [vmem:[#allocation7 + $0x198] sm:$0xff]
    %v412 = vld [vmem:[#allocation7 + $0x1a0] sm:$0xff]
    %v413 = vld [vmem:[#allocation7 + $0x1a8] sm:$0xff]
    %v414 = vld [vmem:[#allocation7 + $0x1b0] sm:$0xff]
    %v415 = vld [vmem:[#allocation7 + $0x1b8] sm:$0xff]
    %v416 = vld [vmem:[#allocation7 + $0x1c0] sm:$0xff]
    %v417 = vld [vmem:[#allocation7 + $0x1c8] sm:$0xff]
    %v418 = vld [vmem:[#allocation7 + $0x1d0] sm:$0xff]
    %v419 = vld [vmem:[#allocation7 + $0x1d8] sm:$0xff]
    %v420 = vld [vmem:[#allocation7 + $0x1e0] sm:$0xff]
    %v421 = vld [vmem:[#allocation7 + $0x1e8] sm:$0xff]
    %v422 = vld [vmem:[#allocation7 + $0x1f0] sm:$0xff]
    %v423 = vld [vmem:[#allocation7 + $0x1f8] sm:$0xff]
    %v424 = vld [vmem:[#allocation7 + $0x200] sm:$0xff]
    %v425 = vld [vmem:[#allocation7 + $0x208] sm:$0xff]
    %v426 = vld [vmem:[#allocation7 + $0x210] sm:$0xff]
    %v427 = vld [vmem:[#allocation7 + $0x218] sm:$0xff]
    %v428 = vld [vmem:[#allocation7 + $0x220] sm:$0xff]
    %v429 = vld [vmem:[#allocation7 + $0x228] sm:$0xff]
    %v430 = vld [vmem:[#allocation7 + $0x230] sm:$0xff]
    %v431 = vld [vmem:[#allocation7 + $0x238] sm:$0xff]
    %v432 = vld [vmem:[#allocation7 + $0x240] sm:$0xff]
    %v433 = vld [vmem:[#allocation7 + $0x248] sm:$0xff]
    %v434 = vld [vmem:[#allocation7 + $0x250] sm:$0xff]
    %v435 = vld [vmem:[#allocation7 + $0x258] sm:$0xff]
    %v436 = vld [vmem:[#allocation7 + $0x260] sm:$0xff]
    %v437 = vld [vmem:[#allocation7 + $0x268] sm:$0xff]
    %v438 = vld [vmem:[#allocation7 + $0x270] sm:$0xff]
    %v439 = vld [vmem:[#allocation7 + $0x278] sm:$0xff]
    %v440 = vld [vmem:[#allocation7 + $0x280] sm:$0xff]
    %v441 = vld [vmem:[#allocation7 + $0x288] sm:$0xff]
    %v442 = vld [vmem:[#allocation7 + $0x290] sm:$0xff]
    %v443 = vld [vmem:[#allocation7 + $0x298] sm:$0xff]
    %v444 = vld [vmem:[#allocation7 + $0x2a0] sm:$0xff]
    %v445 = vld [vmem:[#allocation7 + $0x2a8] sm:$0xff]
    %v446 = vld [vmem:[#allocation7 + $0x2b0] sm:$0xff]
    %v447 = vld [vmem:[#allocation7 + $0x2b8] sm:$0xff]
    %v448 = vld [vmem:[#allocation7 + $0x2c0] sm:$0xff]
    %v449 = vld [vmem:[#allocation7 + $0x2c8] sm:$0xff]
    %v450 = vld [vmem:[#allocation7 + $0x2d0] sm:$0xff]
    %v451 = vld [vmem:[#allocation7 + $0x2d8] sm:$0xff]
    %v452 = vld [vmem:[#allocation7 + $0x2e0] sm:$0xff]
    %v453 = vld [vmem:[#allocation7 + $0x2e8] sm:$0xff]
    %v454 = vld [vmem:[#allocation7 + $0x2f0] sm:$0xff]
    %v455 = vld [vmem:[#allocation7 + $0x2f8] sm:$0xff]
    %v456 = vld [vmem:[#allocation7 + $0x300] sm:$0xff]
    %v457 = vld [vmem:[#allocation7 + $0x308] sm:$0xff]
    %v458 = vld [vmem:[#allocation7 + $0x310] sm:$0xff]
    %v459 = vld [vmem:[#allocation7 + $0x318] sm:$0xff]
    %v460 = vld [vmem:[#allocation7 + $0x320] sm:$0xff]
    %v461 = vld [vmem:[#allocation7 + $0x328] sm:$0xff]
    %v462 = vld [vmem:[#allocation7 + $0x330] sm:$0xff]
    %v463 = vld [vmem:[#allocation7 + $0x338] sm:$0xff]
    %v464 = vld [vmem:[#allocation7 + $0x340] sm:$0xff]
    %v465 = vld [vmem:[#allocation7 + $0x348] sm:$0xff]
    %v466 = vld [vmem:[#allocation7 + $0x350] sm:$0xff]
    %v467 = vld [vmem:[#allocation7 + $0x358] sm:$0xff]
    %v468 = vld [vmem:[#allocation7 + $0x360] sm:$0xff]
    %v469 = vld [vmem:[#allocation7 + $0x368] sm:$0xff]
    %v470 = vld [vmem:[#allocation7 + $0x370] sm:$0xff]
    %v471 = vld [vmem:[#allocation7 + $0x378] sm:$0xff]
    %v472 = vld [vmem:[#allocation7 + $0x380] sm:$0xff]
    %v473 = vld [vmem:[#allocation7 + $0x388] sm:$0xff]
    %v474 = vld [vmem:[#allocation7 + $0x390] sm:$0xff]
    %v475 = vld [vmem:[#allocation7 + $0x398] sm:$0xff]
    %v476 = vld [vmem:[#allocation7 + $0x3a0] sm:$0xff]
    %v477 = vld [vmem:[#allocation7 + $0x3a8] sm:$0xff]
    %v478 = vld [vmem:[#allocation7 + $0x3b0] sm:$0xff]
    %v479 = vld [vmem:[#allocation7 + $0x3b8] sm:$0xff]
    %v480 = vld [vmem:[#allocation7 + $0x3c0] sm:$0xff]
    %v481 = vld [vmem:[#allocation7 + $0x3c8] sm:$0xff]
    %v482 = vld [vmem:[#allocation7 + $0x3d0] sm:$0xff]
    %v483 = vld [vmem:[#allocation7 + $0x3d8] sm:$0xff]
    %v484 = vld [vmem:[#allocation7 + $0x3e0] sm:$0xff]
    %v485 = vld [vmem:[#allocation7 + $0x3e8] sm:$0xff]
    %v486 = vld [vmem:[#allocation7 + $0x3f0] sm:$0xff]
    %v487 = vld [vmem:[#allocation7 + $0x3f8] sm:$0xff]
    %v488 = vld [vmem:[#allocation7 + $0x400] sm:$0xff]
    %v489 = vld [vmem:[#allocation7 + $0x408] sm:$0xff]
    %v490 = vld [vmem:[#allocation7 + $0x410] sm:$0xff]
    %v491 = vld [vmem:[#allocation7 + $0x418] sm:$0xff]
    %v492 = vld [vmem:[#allocation7 + $0x420] sm:$0xff]
    %v493 = vld [vmem:[#allocation7 + $0x428] sm:$0xff]
    %v494 = vld [vmem:[#allocation7 + $0x430] sm:$0xff]
    %v495 = vld [vmem:[#allocation7 + $0x438] sm:$0xff]
    %v496 = vld [vmem:[#allocation7 + $0x440] sm:$0xff]
    %v497 = vld [vmem:[#allocation7 + $0x448] sm:$0xff]
    %v498 = vld [vmem:[#allocation7 + $0x450] sm:$0xff]
    %v499 = vld [vmem:[#allocation7 + $0x458] sm:$0xff]
    %v500 = vld [vmem:[#allocation7 + $0x460] sm:$0xff]
    %v501 = vld [vmem:[#allocation7 + $0x468] sm:$0xff]
    %v502 = vld [vmem:[#allocation7 + $0x470] sm:$0xff]
    %v503 = vld [vmem:[#allocation7 + $0x478] sm:$0xff]
    %v504 = vld [vmem:[#allocation7 + $0x480] sm:$0xff]
    %v505 = vld [vmem:[#allocation7 + $0x488] sm:$0xff]
    %v506 = vld [vmem:[#allocation7 + $0x490] sm:$0xff]
    %v507 = vld [vmem:[#allocation7 + $0x498] sm:$0xff]
    %v508 = vld [vmem:[#allocation7 + $0x4a0] sm:$0xff]
    %v509 = vld [vmem:[#allocation7 + $0x4a8] sm:$0xff]
    %v510 = vld [vmem:[#allocation7 + $0x4b0] sm:$0xff]
    %v511 = vld [vmem:[#allocation7 + $0x4b8] sm:$0xff]
    %v512 = vld [vmem:[#allocation7 + $0x4c0] sm:$0xff]
    %v513 = vld [vmem:[#allocation7 + $0x4c8] sm:$0xff]
    %v514 = vld [vmem:[#allocation7 + $0x4d0] sm:$0xff]
    %v515 = vld [vmem:[#allocation7 + $0x4d8] sm:$0xff]
    %v516 = vld [vmem:[#allocation7 + $0x4e0] sm:$0xff]
    %v517 = vld [vmem:[#allocation7 + $0x4e8] sm:$0xff]
    %v518 = vld [vmem:[#allocation7 + $0x4f0] sm:$0xff]
    %v519 = vld [vmem:[#allocation7 + $0x4f8] sm:$0xff]
    %v520 = vld [vmem:[#allocation7 + $0x500] sm:$0xff]
    %v521 = vld [vmem:[#allocation7 + $0x508] sm:$0xff]
    %v522 = vld [vmem:[#allocation7 + $0x510] sm:$0xff]
    %v523 = vld [vmem:[#allocation7 + $0x518] sm:$0xff]
    %v524 = vld [vmem:[#allocation7 + $0x520] sm:$0xff]
    %v525 = vld [vmem:[#allocation7 + $0x528] sm:$0xff]
    %v526 = vld [vmem:[#allocation7 + $0x530] sm:$0xff]
    %v527 = vld [vmem:[#allocation7 + $0x538] sm:$0xff]
    %v528 = vld [vmem:[#allocation7 + $0x540] sm:$0xff]
    %v529 = vld [vmem:[#allocation7 + $0x548] sm:$0xff]
    %v530 = vld [vmem:[#allocation7 + $0x550] sm:$0xff]
    %v531 = vld [vmem:[#allocation7 + $0x558] sm:$0xff]
    %v532 = vld [vmem:[#allocation7 + $0x560] sm:$0xff]
    %v533 = vld [vmem:[#allocation7 + $0x568] sm:$0xff]
    %v534 = vld [vmem:[#allocation7 + $0x570] sm:$0xff]
    %v535 = vld [vmem:[#allocation7 + $0x578] sm:$0xff]
    %v536 = vld [vmem:[#allocation7 + $0x580] sm:$0xff]
    %v537 = vld [vmem:[#allocation7 + $0x588] sm:$0xff]
    %v538 = vld [vmem:[#allocation7 + $0x590] sm:$0xff]
    %v539 = vld [vmem:[#allocation7 + $0x598] sm:$0xff]
    %v540 = vld [vmem:[#allocation7 + $0x5a0] sm:$0xff]
    %v541 = vld [vmem:[#allocation7 + $0x5a8] sm:$0xff]
    %v542 = vld [vmem:[#allocation7 + $0x5b0] sm:$0xff]
    %v543 = vld [vmem:[#allocation7 + $0x5b8] sm:$0xff]
    %v544 = vld [vmem:[#allocation7 + $0x5c0] sm:$0xff]
    %v545 = vld [vmem:[#allocation7 + $0x5c8] sm:$0xff]
    %v546 = vld [vmem:[#allocation7 + $0x5d0] sm:$0xff]
    %v547 = vld [vmem:[#allocation7 + $0x5d8] sm:$0xff]
    %v548 = vld [vmem:[#allocation7 + $0x5e0] sm:$0xff]
    %v549 = vld [vmem:[#allocation7 + $0x5e8] sm:$0xff]
    %v550 = vld [vmem:[#allocation7 + $0x5f0] sm:$0xff]
    %v551 = vld [vmem:[#allocation7 + $0x5f8] sm:$0xff]
    %v552 = vld [vmem:[#allocation7 + $0x600] sm:$0xff]
    %v553 = vld [vmem:[#allocation7 + $0x608] sm:$0xff]
    %v554 = vld [vmem:[#allocation7 + $0x610] sm:$0xff]
    %v555 = vld [vmem:[#allocation7 + $0x618] sm:$0xff]
    %v556 = vld [vmem:[#allocation7 + $0x620] sm:$0xff]
    %v557 = vld [vmem:[#allocation7 + $0x628] sm:$0xff]
    %v558 = vld [vmem:[#allocation7 + $0x630] sm:$0xff]
    %v559 = vld [vmem:[#allocation7 + $0x638] sm:$0xff]
    %v560 = vld [vmem:[#allocation7 + $0x640] sm:$0xff]
    %v561 = vld [vmem:[#allocation7 + $0x648] sm:$0xff]
    %v562 = vld [vmem:[#allocation7 + $0x650] sm:$0xff]
    %v563 = vld [vmem:[#allocation7 + $0x658] sm:$0xff]
    %v564 = vld [vmem:[#allocation7 + $0x660] sm:$0xff]
    %v565 = vld [vmem:[#allocation7 + $0x668] sm:$0xff]
    %v566 = vld [vmem:[#allocation7 + $0x670] sm:$0xff]
    %v567 = vld [vmem:[#allocation7 + $0x678] sm:$0xff]
    %v568 = vld [vmem:[#allocation7 + $0x680] sm:$0xff]
    %v569 = vld [vmem:[#allocation7 + $0x688] sm:$0xff]
    %v570 = vld [vmem:[#allocation7 + $0x690] sm:$0xff]
    %v571 = vld [vmem:[#allocation7 + $0x698] sm:$0xff]
    %v572 = vld [vmem:[#allocation7 + $0x6a0] sm:$0xff]
    %v573 = vld [vmem:[#allocation7 + $0x6a8] sm:$0xff]
    %v574 = vld [vmem:[#allocation7 + $0x6b0] sm:$0xff]
    %v575 = vld [vmem:[#allocation7 + $0x6b8] sm:$0xff]
    %v576 = vld [vmem:[#allocation7 + $0x6c0] sm:$0xff]
    %v577 = vld [vmem:[#allocation7 + $0x6c8] sm:$0xff]
    %v578 = vld [vmem:[#allocation7 + $0x6d0] sm:$0xff]
    %v579 = vld [vmem:[#allocation7 + $0x6d8] sm:$0xff]
    %v580 = vld [vmem:[#allocation7 + $0x6e0] sm:$0xff]
    %v581 = vld [vmem:[#allocation7 + $0x6e8] sm:$0xff]
    %v582 = vld [vmem:[#allocation7 + $0x6f0] sm:$0xff]
    %v583 = vld [vmem:[#allocation7 + $0x6f8] sm:$0xff]
    %v584 = vld [vmem:[#allocation7 + $0x700] sm:$0xff]
    %v585 = vld [vmem:[#allocation7 + $0x708] sm:$0xff]
    %v586 = vld [vmem:[#allocation7 + $0x710] sm:$0xff]
    %v587 = vld [vmem:[#allocation7 + $0x718] sm:$0xff]
    %v588 = vld [vmem:[#allocation7 + $0x720] sm:$0xff]
    %v589 = vld [vmem:[#allocation7 + $0x728] sm:$0xff]
    %v590 = vld [vmem:[#allocation7 + $0x730] sm:$0xff]
    %v591 = vld [vmem:[#allocation7 + $0x738] sm:$0xff]
    %v592 = vld [vmem:[#allocation7 + $0x740] sm:$0xff]
    %v593 = vld [vmem:[#allocation7 + $0x748] sm:$0xff]
    %v594 = vld [vmem:[#allocation7 + $0x750] sm:$0xff]
    %v595 = vld [vmem:[#allocation7 + $0x758] sm:$0xff]
    %v596 = vld [vmem:[#allocation7 + $0x760] sm:$0xff]
    %v597 = vld [vmem:[#allocation7 + $0x768] sm:$0xff]
    %v598 = vld [vmem:[#allocation7 + $0x770] sm:$0xff]
    %v599 = vld [vmem:[#allocation7 + $0x778] sm:$0xff]
    %v600 = vld [vmem:[%s4] sm:$0x7]
    %v602 = vlaneseq
    %v603 = vshrl.u32 %v602, 7
    %v604 = vsub.s32 0, %v603
    %v605 = vrot.slane %v600, %v604
    %v606 = vlaneseq
    %v607 = vshrl.u32 %v606, 7
    %v608 = vsub.s32 1, %v607
    %v609 = vrot.slane %v600, %v608
    %v610 = vlaneseq
    %v611 = vshrl.u32 %v610, 7
    %v612 = vsub.s32 2, %v611
    %v613 = vrot.slane %v600, %v612
    %617 = vmatprep.subr.mxu0 %v406
    %618 = vmatpush1.msra.mxu0 %v405
    %619 = vmatprep.subr.mxu0 %v403
    %620 = vmatpush1.msra.mxu0 %v402
    %621 = vmatprep.subr.mxu0 %v400
    %622 = vmatpush1.msra.mxu0 %v399
    %623 = vmatprep.subr.mxu0 %v397
    %624 = vmatpush1.msra.mxu0 %v396
    %625 = vmatprep.subr.mxu0 %v394
    %626 = vmatpush1.msra.mxu0 %v393
    %627 = vmatprep.subr.mxu0 %v391
    %628 = vmatpush1.msra.mxu0 %v390
    %629 = vmatprep.subr.mxu0 %v388
    %630 = vmatpush1.msra.mxu0 %v387
    %631 = vmatprep.subr.mxu0 %v385
    %632 = vmatpush1.msra.mxu0 %v384
    %633 = vmatprep.subr.mxu0 %v382
    %634 = vmatpush1.msra.mxu0 %v381
    %635 = vmatprep.subr.mxu0 %v379
    %636 = vmatpush1.msra.mxu0 %v378
    %637 = vmatprep.subr.mxu0 %v376
    %638 = vmatpush1.msra.mxu0 %v375
    %639 = vmatprep.subr.mxu0 %v373
    %640 = vmatpush1.msra.mxu0 %v372
    %641 = vmatprep.subr.mxu0 %v370
    %642 = vmatpush1.msra.mxu0 %v369
    %643 = vmatprep.subr.mxu0 %v367
    %644 = vmatpush1.msra.mxu0 %v366
    %645 = vmatprep.subr.mxu0 %v364
    %646 = vmatpush1.msra.mxu0 %v363
    %647 = vmatprep.subr.mxu0 %v361
    %648 = vmatpush1.msra.mxu0 %v360
    %649 = vmatprep.subr.mxu0 %v454
    %650 = vmatpush2.msra.mxu0 %v453
    %651 = vmatprep.subr.mxu0 %v451
    %652 = vmatpush2.msra.mxu0 %v450
    %653 = vmatprep.subr.mxu0 %v448
    %654 = vmatpush2.msra.mxu0 %v447
    %655 = vmatprep.subr.mxu0 %v445
    %656 = vmatpush2.msra.mxu0 %v444
    %657 = vmatprep.subr.mxu0 %v442
    %658 = vmatpush2.msra.mxu0 %v441
    %659 = vmatprep.subr.mxu0 %v439
    %660 = vmatpush2.msra.mxu0 %v438
    %661 = vmatprep.subr.mxu0 %v436
    %662 = vmatpush2.msra.mxu0 %v435
    %663 = vmatprep.subr.mxu0 %v433
    %664 = vmatpush2.msra.mxu0 %v432
    %665 = vmatprep.subr.mxu0 %v430
    %666 = vmatpush2.msra.mxu0 %v429
    %667 = vmatprep.subr.mxu0 %v427
    %668 = vmatpush2.msra.mxu0 %v426
    %669 = vmatprep.subr.mxu0 %v424
    %670 = vmatpush2.msra.mxu0 %v423
    %671 = vmatprep.subr.mxu0 %v421
    %672 = vmatpush2.msra.mxu0 %v420
    %673 = vmatprep.subr.mxu0 %v418
    %674 = vmatpush2.msra.mxu0 %v417
    %675 = vmatprep.subr.mxu0 %v415
    %676 = vmatpush2.msra.mxu0 %v414
    %677 = vmatprep.subr.mxu0 %v412
    %678 = vmatpush2.msra.mxu0 %v411
    %679 = vmatprep.subr.mxu0 %v409
    %680 = vmatpush2.msra.mxu0 %v408
    %681 = vmatprep.mubr.f32.mxu0 %v356
    %682 = vmatmul.mubr.f32.gmra.mxu0 %v355
    %v683 = vpop.f32.mrf.mxu0
    %v684 = vadd.f32 %v605, %v683
    %v685 = vpop.f32.mrf.mxu0
    %v686 = vadd.f32 %v609, %v685
    %687 = vdwg.mxu0
    %688 = vmatprep.subr.mxu0 %v502
    %689 = vmatpush1.msra.mxu0 %v501
    %690 = vmatprep.subr.mxu0 %v499
    %691 = vmatpush1.msra.mxu0 %v498
    %692 = vmatprep.subr.mxu0 %v496
    %693 = vmatpush1.msra.mxu0 %v495
    %694 = vmatprep.subr.mxu0 %v493
    %695 = vmatpush1.msra.mxu0 %v492
    %696 = vmatprep.subr.mxu0 %v490
    %697 = vmatpush1.msra.mxu0 %v489
    %698 = vmatprep.subr.mxu0 %v487
    %699 = vmatpush1.msra.mxu0 %v486
    %700 = vmatprep.subr.mxu0 %v484
    %701 = vmatpush1.msra.mxu0 %v483
    %702 = vmatprep.subr.mxu0 %v481
    %703 = vmatpush1.msra.mxu0 %v480
    %704 = vmatprep.subr.mxu0 %v478
    %705 = vmatpush1.msra.mxu0 %v477
    %706 = vmatprep.subr.mxu0 %v475
    %707 = vmatpush1.msra.mxu0 %v474
    %708 = vmatprep.subr.mxu0 %v472
    %709 = vmatpush1.msra.mxu0 %v471
    %710 = vmatprep.subr.mxu0 %v469
    %711 = vmatpush1.msra.mxu0 %v468
    %712 = vmatprep.subr.mxu0 %v466
    %713 = vmatpush1.msra.mxu0 %v465
    %714 = vmatprep.subr.mxu0 %v463
    %715 = vmatpush1.msra.mxu0 %v462
    %716 = vmatprep.subr.mxu0 %v460
    %717 = vmatpush1.msra.mxu0 %v459
    %718 = vmatprep.subr.mxu0 %v457
    %719 = vmatpush1.msra.mxu0 %v456
    %720 = vmatprep.subr.mxu0 %v550
    %721 = vmatpush2.msra.mxu0 %v549
    %722 = vmatprep.subr.mxu0 %v547
    %723 = vmatpush2.msra.mxu0 %v546
    %724 = vmatprep.subr.mxu0 %v544
    %725 = vmatpush2.msra.mxu0 %v543
    %726 = vmatprep.subr.mxu0 %v541
    %727 = vmatpush2.msra.mxu0 %v540
    %728 = vmatprep.subr.mxu0 %v538
    %729 = vmatpush2.msra.mxu0 %v537
    %730 = vmatprep.subr.mxu0 %v535
    %731 = vmatpush2.msra.mxu0 %v534
    %732 = vmatprep.subr.mxu0 %v532
    %733 = vmatpush2.msra.mxu0 %v531
    %734 = vmatprep.subr.mxu0 %v529
    %735 = vmatpush2.msra.mxu0 %v528
    %736 = vmatprep.subr.mxu0 %v526
    %737 = vmatpush2.msra.mxu0 %v525
    %738 = vmatprep.subr.mxu0 %v523
    %739 = vmatpush2.msra.mxu0 %v522
    %740 = vmatprep.subr.mxu0 %v520
    %741 = vmatpush2.msra.mxu0 %v519
    %742 = vmatprep.subr.mxu0 %v517
    %743 = vmatpush2.msra.mxu0 %v516
    %744 = vmatprep.subr.mxu0 %v514
    %745 = vmatpush2.msra.mxu0 %v513
    %746 = vmatprep.subr.mxu0 %v511
    %747 = vmatpush2.msra.mxu0 %v510
    %748 = vmatprep.subr.mxu0 %v508
    %749 = vmatpush2.msra.mxu0 %v507
    %750 = vmatprep.subr.mxu0 %v505
    %751 = vmatpush2.msra.mxu0 %v504
    %752 = vmatprep.mubr.f32.mxu0 %v358
    %753 = vmatmul.mubr.f32.gmra.mxu0 %v357
    %v754 = vpop.f32.mrf.mxu0
    %v755 = vadd.f32 %v684, %v754
    %v756 = vpop.f32.mrf.mxu0
    %v757 = vadd.f32 %v686, %v756
    %758 = vdwg.mxu0
    %759 = vmatprep.subr.mxu0 %v598
    %760 = vmatpush1.msra.mxu0 %v597
    %761 = vmatprep.subr.mxu0 %v595
    %762 = vmatpush1.msra.mxu0 %v594
    %763 = vmatprep.subr.mxu0 %v592
    %764 = vmatpush1.msra.mxu0 %v591
    %765 = vmatprep.subr.mxu0 %v589
    %766 = vmatpush1.msra.mxu0 %v588
    %767 = vmatprep.subr.mxu0 %v586
    %768 = vmatpush1.msra.mxu0 %v585
    %769 = vmatprep.subr.mxu0 %v583
    %770 = vmatpush1.msra.mxu0 %v582
    %771 = vmatprep.subr.mxu0 %v580
    %772 = vmatpush1.msra.mxu0 %v579
    %773 = vmatprep.subr.mxu0 %v577
    %774 = vmatpush1.msra.mxu0 %v576
    %775 = vmatprep.subr.mxu0 %v574
    %776 = vmatpush1.msra.mxu0 %v573
    %777 = vmatprep.subr.mxu0 %v571
    %778 = vmatpush1.msra.mxu0 %v570
    %779 = vmatprep.subr.mxu0 %v568
    %780 = vmatpush1.msra.mxu0 %v567
    %781 = vmatprep.subr.mxu0 %v565
    %782 = vmatpush1.msra.mxu0 %v564
    %783 = vmatprep.subr.mxu0 %v562
    %784 = vmatpush1.msra.mxu0 %v561
    %785 = vmatprep.subr.mxu0 %v559
    %786 = vmatpush1.msra.mxu0 %v558
    %787 = vmatprep.subr.mxu0 %v556
    %788 = vmatpush1.msra.mxu0 %v555
    %789 = vmatprep.subr.mxu0 %v553
    %790 = vmatpush1.msra.mxu0 %v552
    %791 = vmatprep.subr.mxu0 0.0
    %792 = vmatpush2.msra.mxu0 0.0
    %793 = vmatprep.subr.mxu0 0.0
    %794 = vmatpush2.msra.mxu0 0.0
    %795 = vmatprep.subr.mxu0 0.0
    %796 = vmatpush2.msra.mxu0 0.0
    %797 = vmatprep.subr.mxu0 0.0
    %798 = vmatpush2.msra.mxu0 0.0
    %799 = vmatprep.subr.mxu0 0.0
    %800 = vmatpush2.msra.mxu0 0.0
    %801 = vmatprep.subr.mxu0 0.0
    %802 = vmatpush2.msra.mxu0 0.0
    %803 = vmatprep.subr.mxu0 0.0
    %804 = vmatpush2.msra.mxu0 0.0
    %805 = vmatprep.subr.mxu0 0.0
    %806 = vmatpush2.msra.mxu0 0.0
    %807 = vmatprep.subr.mxu0 0.0
    %808 = vmatpush2.msra.mxu0 0.0
    %809 = vmatprep.subr.mxu0 0.0
    %810 = vmatpush2.msra.mxu0 0.0
    %811 = vmatprep.subr.mxu0 0.0
    %812 = vmatpush2.msra.mxu0 0.0
    %813 = vmatprep.subr.mxu0 0.0
    %814 = vmatpush2.msra.mxu0 0.0
    %815 = vmatprep.subr.mxu0 0.0
    %816 = vmatpush2.msra.mxu0 0.0
    %817 = vmatprep.subr.mxu0 0.0
    %818 = vmatpush2.msra.mxu0 0.0
    %819 = vmatprep.subr.mxu0 0.0
    %820 = vmatpush2.msra.mxu0 0.0
    %821 = vmatprep.subr.mxu0 0.0
    %822 = vmatpush2.msra.mxu0 0.0
    %823 = vmatprep.mubr.f32.mxu0 0.0
    %824 = vmatmul.mubr.f32.gmra.mxu0 %v359
    %v825 = vpop.f32.mrf.mxu0
    %v826 = vadd.f32 %v755, %v825
    %v827 = vpop.f32.mrf.mxu0
    %v828 = vadd.f32 %v757, %v827
    %829 = vdwg.mxu0
    %830 = vmatprep.subr.mxu0 0.0
    %831 = vmatpush1.msra.mxu0 %v407
    %832 = vmatprep.subr.mxu0 0.0
    %833 = vmatpush1.msra.mxu0 %v404
    %834 = vmatprep.subr.mxu0 0.0
    %835 = vmatpush1.msra.mxu0 %v401
    %836 = vmatprep.subr.mxu0 0.0
    %837 = vmatpush1.msra.mxu0 %v398
    %838 = vmatprep.subr.mxu0 0.0
    %839 = vmatpush1.msra.mxu0 %v395
    %840 = vmatprep.subr.mxu0 0.0
    %841 = vmatpush1.msra.mxu0 %v392
    %842 = vmatprep.subr.mxu0 0.0
    %843 = vmatpush1.msra.mxu0 %v389
    %844 = vmatprep.subr.mxu0 0.0
    %845 = vmatpush1.msra.mxu0 %v386
    %846 = vmatprep.subr.mxu0 0.0
    %847 = vmatpush1.msra.mxu0 %v383
    %848 = vmatprep.subr.mxu0 0.0
    %849 = vmatpush1.msra.mxu0 %v380
    %850 = vmatprep.subr.mxu0 0.0
    %851 = vmatpush1.msra.mxu0 %v377
    %852 = vmatprep.subr.mxu0 0.0
    %853 = vmatpush1.msra.mxu0 %v374
    %854 = vmatprep.subr.mxu0 0.0
    %855 = vmatpush1.msra.mxu0 %v371
    %856 = vmatprep.subr.mxu0 0.0
    %857 = vmatpush1.msra.mxu0 %v368
    %858 = vmatprep.subr.mxu0 0.0
    %859 = vmatpush1.msra.mxu0 %v365
    %860 = vmatprep.subr.mxu0 0.0
    %861 = vmatpush1.msra.mxu0 %v362
    %862 = vmatprep.subr.mxu0 0.0
    %863 = vmatpush2.msra.mxu0 %v455
    %864 = vmatprep.subr.mxu0 0.0
    %865 = vmatpush2.msra.mxu0 %v452
    %866 = vmatprep.subr.mxu0 0.0
    %867 = vmatpush2.msra.mxu0 %v449
    %868 = vmatprep.subr.mxu0 0.0
    %869 = vmatpush2.msra.mxu0 %v446
    %870 = vmatprep.subr.mxu0 0.0
    %871 = vmatpush2.msra.mxu0 %v443
    %872 = vmatprep.subr.mxu0 0.0
    %873 = vmatpush2.msra.mxu0 %v440
    %874 = vmatprep.subr.mxu0 0.0
    %875 = vmatpush2.msra.mxu0 %v437
    %876 = vmatprep.subr.mxu0 0.0
    %877 = vmatpush2.msra.mxu0 %v434
    %878 = vmatprep.subr.mxu0 0.0
    %879 = vmatpush2.msra.mxu0 %v431
    %880 = vmatprep.subr.mxu0 0.0
    %881 = vmatpush2.msra.mxu0 %v428
    %882 = vmatprep.subr.mxu0 0.0
    %883 = vmatpush2.msra.mxu0 %v425
    %884 = vmatprep.subr.mxu0 0.0
    %885 = vmatpush2.msra.mxu0 %v422
    %886 = vmatprep.subr.mxu0 0.0
    %887 = vmatpush2.msra.mxu0 %v419
    %888 = vmatprep.subr.mxu0 0.0
    %889 = vmatpush2.msra.mxu0 %v416
    %890 = vmatprep.subr.mxu0 0.0
    %891 = vmatpush2.msra.mxu0 %v413
    %892 = vmatprep.subr.mxu0 0.0
    %893 = vmatpush2.msra.mxu0 %v410
    %894 = vmatprep.mubr.f32.mxu0 %v356
    %895 = vmatmul.mubr.f32.gmra.mxu0 %v355
    %v896 = vpop.f32.mrf.mxu0
    %v897 = vadd.f32 %v613, %v896
    %v898 = vpop.f32.mrf.mxu0
    %899 = vdwg.mxu0
    %900 = vmatprep.subr.mxu0 0.0
    %901 = vmatpush1.msra.mxu0 %v503
    %902 = vmatprep.subr.mxu0 0.0
    %903 = vmatpush1.msra.mxu0 %v500
    %904 = vmatprep.subr.mxu0 0.0
    %905 = vmatpush1.msra.mxu0 %v497
    %906 = vmatprep.subr.mxu0 0.0
    %907 = vmatpush1.msra.mxu0 %v494
    %908 = vmatprep.subr.mxu0 0.0
    %909 = vmatpush1.msra.mxu0 %v491
    %910 = vmatprep.subr.mxu0 0.0
    %911 = vmatpush1.msra.mxu0 %v488
    %912 = vmatprep.subr.mxu0 0.0
    %913 = vmatpush1.msra.mxu0 %v485
    %914 = vmatprep.subr.mxu0 0.0
    %915 = vmatpush1.msra.mxu0 %v482
    %916 = vmatprep.subr.mxu0 0.0
    %917 = vmatpush1.msra.mxu0 %v479
    %918 = vmatprep.subr.mxu0 0.0
    %919 = vmatpush1.msra.mxu0 %v476
    %920 = vmatprep.subr.mxu0 0.0
    %921 = vmatpush1.msra.mxu0 %v473
    %922 = vmatprep.subr.mxu0 0.0
    %923 = vmatpush1.msra.mxu0 %v470
    %924 = vmatprep.subr.mxu0 0.0
    %925 = vmatpush1.msra.mxu0 %v467
    %926 = vmatprep.subr.mxu0 0.0
    %927 = vmatpush1.msra.mxu0 %v464
    %928 = vmatprep.subr.mxu0 0.0
    %929 = vmatpush1.msra.mxu0 %v461
    %930 = vmatprep.subr.mxu0 0.0
    %931 = vmatpush1.msra.mxu0 %v458
    %932 = vmatprep.subr.mxu0 0.0
    %933 = vmatpush2.msra.mxu0 %v551
    %934 = vmatprep.subr.mxu0 0.0
    %935 = vmatpush2.msra.mxu0 %v548
    %936 = vmatprep.subr.mxu0 0.0
    %937 = vmatpush2.msra.mxu0 %v545
    %938 = vmatprep.subr.mxu0 0.0
    %939 = vmatpush2.msra.mxu0 %v542
    %940 = vmatprep.subr.mxu0 0.0
    %941 = vmatpush2.msra.mxu0 %v539
    %942 = vmatprep.subr.mxu0 0.0
    %943 = vmatpush2.msra.mxu0 %v536
    %944 = vmatprep.subr.mxu0 0.0
    %945 = vmatpush2.msra.mxu0 %v533
    %946 = vmatprep.subr.mxu0 0.0
    %947 = vmatpush2.msra.mxu0 %v530
    %948 = vmatprep.subr.mxu0 0.0
    %949 = vmatpush2.msra.mxu0 %v527
    %950 = vmatprep.subr.mxu0 0.0
    %951 = vmatpush2.msra.mxu0 %v524
    %952 = vmatprep.subr.mxu0 0.0
    %953 = vmatpush2.msra.mxu0 %v521
    %954 = vmatprep.subr.mxu0 0.0
    %955 = vmatpush2.msra.mxu0 %v518
    %956 = vmatprep.subr.mxu0 0.0
    %957 = vmatpush2.msra.mxu0 %v515
    %958 = vmatprep.subr.mxu0 0.0
    %959 = vmatpush2.msra.mxu0 %v512
    %960 = vmatprep.subr.mxu0 0.0
    %961 = vmatpush2.msra.mxu0 %v509
    %962 = vmatprep.subr.mxu0 0.0
    %963 = vmatpush2.msra.mxu0 %v506
    %964 = vmatprep.mubr.f32.mxu0 %v358
    %965 = vmatmul.mubr.f32.gmra.mxu0 %v357
    %v966 = vpop.f32.mrf.mxu0
    %v967 = vadd.f32 %v897, %v966
    %v968 = vpop.f32.mrf.mxu0
    %969 = vdwg.mxu0
    %970 = vmatprep.subr.mxu0 0.0
    %971 = vmatpush1.msra.mxu0 %v599
    %972 = vmatprep.subr.mxu0 0.0
    %973 = vmatpush1.msra.mxu0 %v596
    %974 = vmatprep.subr.mxu0 0.0
    %975 = vmatpush1.msra.mxu0 %v593
    %976 = vmatprep.subr.mxu0 0.0
    %977 = vmatpush1.msra.mxu0 %v590
    %978 = vmatprep.subr.mxu0 0.0
    %979 = vmatpush1.msra.mxu0 %v587
    %980 = vmatprep.subr.mxu0 0.0
    %981 = vmatpush1.msra.mxu0 %v584
    %982 = vmatprep.subr.mxu0 0.0
    %983 = vmatpush1.msra.mxu0 %v581
    %984 = vmatprep.subr.mxu0 0.0
    %985 = vmatpush1.msra.mxu0 %v578
    %986 = vmatprep.subr.mxu0 0.0
    %987 = vmatpush1.msra.mxu0 %v575
    %988 = vmatprep.subr.mxu0 0.0
    %989 = vmatpush1.msra.mxu0 %v572
    %990 = vmatprep.subr.mxu0 0.0
    %991 = vmatpush1.msra.mxu0 %v569
    %992 = vmatprep.subr.mxu0 0.0
    %993 = vmatpush1.msra.mxu0 %v566
    %994 = vmatprep.subr.mxu0 0.0
    %995 = vmatpush1.msra.mxu0 %v563
    %996 = vmatprep.subr.mxu0 0.0
    %997 = vmatpush1.msra.mxu0 %v560
    %998 = vmatprep.subr.mxu0 0.0
    %999 = vmatpush1.msra.mxu0 %v557
    %1000 = vmatprep.subr.mxu0 0.0
    %1001 = vmatpush1.msra.mxu0 %v554
    %1002 = vmatprep.subr.mxu0 0.0
    %1003 = vmatpush2.msra.mxu0 0.0
    %1004 = vmatprep.subr.mxu0 0.0
    %1005 = vmatpush2.msra.mxu0 0.0
    %1006 = vmatprep.subr.mxu0 0.0
    %1007 = vmatpush2.msra.mxu0 0.0
    %1008 = vmatprep.subr.mxu0 0.0
    %1009 = vmatpush2.msra.mxu0 0.0
    %1010 = vmatprep.subr.mxu0 0.0
    %1011 = vmatpush2.msra.mxu0 0.0
    %1012 = vmatprep.subr.mxu0 0.0
    %1013 = vmatpush2.msra.mxu0 0.0
    %1014 = vmatprep.subr.mxu0 0.0
    %1015 = vmatpush2.msra.mxu0 0.0
    %1016 = vmatprep.subr.mxu0 0.0
    %1017 = vmatpush2.msra.mxu0 0.0
    %1018 = vmatprep.subr.mxu0 0.0
    %1019 = vmatpush2.msra.mxu0 0.0
    %1020 = vmatprep.subr.mxu0 0.0
    %1021 = vmatpush2.msra.mxu0 0.0
    %1022 = vmatprep.subr.mxu0 0.0
    %1023 = vmatpush2.msra.mxu0 0.0
    %1024 = vmatprep.subr.mxu0 0.0
    %1025 = vmatpush2.msra.mxu0 0.0
    %1026 = vmatprep.subr.mxu0 0.0
    %1027 = vmatpush2.msra.mxu0 0.0
    %1028 = vmatprep.subr.mxu0 0.0
    %1029 = vmatpush2.msra.mxu0 0.0
    %1030 = vmatprep.subr.mxu0 0.0
    %1031 = vmatpush2.msra.mxu0 0.0
    %1032 = vmatprep.subr.mxu0 0.0
    %1033 = vmatpush2.msra.mxu0 0.0
    %1034 = vmatprep.mubr.f32.mxu0 0.0
    %1035 = vmatmul.mubr.f32.gmra.mxu0 %v359
    %v1036 = vpop.f32.mrf.mxu0
    %v1037 = vadd.f32 %v967, %v1036
    %v1038 = vpop.f32.mrf.mxu0
    %1039 = vdwg.mxu0
    %1040 = vst [vmem:[%s5] sm:$0xff] %v826
    %1041 = vst [vmem:[%s5 + $0x8] sm:$0xff] %v828
    %1042 = vst [vmem:[%s5 + $0x10] sm:$0xff] %v1037
    // Predicated region
    $region38: #{gaussian_projector_forward.1} parent=1 // pred_check
      _
    $region39: #{gaussian_projector_forward.1} parent=1 // pred_check_branch
      %1044 = sbr.rel (0) target = $region41
    $region40: #{gaussian_projector_forward.1} parent=1 // pred_region
      _
    $region41: #{gaussian_projector_forward.1} parent=1 // pred_fallthru
      _
    // Predicated region
    $region42: #{gaussian_projector_forward.1} parent=1 // pred_check
      _
    $region43: #{gaussian_projector_forward.1} parent=1 // pred_check_branch
      %1046 = sbr.rel (0) target = $region45
    $region44: #{gaussian_projector_forward.1} parent=1 // pred_region
      _
    $region45: #{gaussian_projector_forward.1} parent=1 // pred_fallthru
      _
    %1047 = vsyncpa [#allocation3], 1
    %1048 = vsyncpa [#allocation5], 1
    %1049 = vsyncpa [#allocation8], 1

</llo_original>
